<compile_context>
chip_gen: v7x
topology: tpu7x:2x2x1
jax: 0.10.0
libtpu: 0.0.40
codegen_flags: <defaults>
</compile_context>

<pallas_src>
import functools
import math

import jax
import jax.numpy as jnp
from jax import lax
from jax.experimental import pallas as pl
from jax.experimental.pallas import tpu as pltpu

_LANE = 128     # lane width (last-dim alignment for hidden activations)
_SUBLANE = 8    # sublane alignment (second-to-last dim of blocks)


def _round_up(x: int, m: int) -> int:
    return ((x + m - 1) // m) * m


def _vmem_capacity_bytes() -> int:
    """Physical VMEM per TensorCore; conservative fallback if the query is unavailable."""
    try:
        return int(pltpu.get_tpu_info().vmem_capacity_bytes)
    except Exception:
        return 64 * 1024 * 1024   # v7x per-TC physical VMEM (smallest of v5e/v6e/v7x)


def _apply_activation(y, name: str, approximate_gelu: bool):
    if name == "gelu":
        if approximate_gelu:
            # tanh-approx GELU lowers to the EUP (separate VLIW slot) -> frees VALU slots.
            # Slight (~1e-3) deviation from torch's exact-erf GELU.
            c = math.sqrt(2.0 / math.pi)
            return 0.5 * y * (1.0 + jnp.tanh(c * (y + 0.044715 * y * y * y)))
        # exact (erf-based) GELU, matching torch.nn.GELU() default
        return 0.5 * y * (1.0 + lax.erf(y * (1.0 / math.sqrt(2.0))))
    if name == "relu":
        return jnp.maximum(y, 0.0)
    if name == "leaky_relu":
        return jnp.where(y >= 0.0, y, 0.01 * y)   # PyTorch default negative_slope=0.01
    raise ValueError(f"Unsupported activation function: {name}")


def _fused_mlp_kernel(*refs, n_layers: int, activation: str, matmul_dtype,
                      approximate_gelu: bool):
    # refs = (x_ref, w_0..w_{L-1}, b_0..b_{L-1}, o_ref)
    x_ref = refs[0]
    w_refs = refs[1:1 + n_layers]
    b_refs = refs[1 + n_layers:1 + 2 * n_layers]
    o_ref = refs[1 + 2 * n_layers]

    h = x_ref[...].astype(matmul_dtype)                     # cast to bf16 in-kernel (no HBM pre-pass)
    for li in range(n_layers):                              # statically unrolled
        y = jnp.dot(h, w_refs[li][...], preferred_element_type=jnp.float32)
        y = y + b_refs[li][...]                             # (1, N) f32 broadcast
        if li < n_layers - 1:
            y = _apply_activation(y, activation, approximate_gelu)   # activations kept in f32
            h = y.astype(matmul_dtype)                      # back to bf16 for the next MXU pass
        else:
            o_ref[...] = y.astype(o_ref.dtype)              # store directly in caller dtype


def init_mlp_params(key, input_size, output_size, hidden_sizes=None, dtype=jnp.float32):
    """Deterministic init mirroring nn.Linear defaults (uniform +-1/sqrt(fan_in)).
    Weights stored PyTorch-style: (out_features, in_features)."""
    if hidden_sizes:
        layer_sizes = [input_size] + list(hidden_sizes) + [output_size]
    else:
        layer_sizes = [input_size, output_size]
    params = []
    for i in range(len(layer_sizes) - 1):
        fan_in, fan_out = layer_sizes[i], layer_sizes[i + 1]
        key, kw, kb = jax.random.split(key, 3)
        bound = 1.0 / math.sqrt(fan_in)
        w = jax.random.uniform(kw, (fan_out, fan_in), dtype, -bound, bound)
        b = jax.random.uniform(kb, (fan_out,), dtype, -bound, bound)
        params.append((w, b))
    return params


def make_mlp_forward(params, activation_function="gelu", *,
                     matmul_dtype=jnp.bfloat16, tile_m=1024, approximate_gelu=False):
    """Prepares (pre-transposes / pads hidden dims / casts) the weights ONCE and returns a
    jitted forward(x) running the whole MLP in a single fused Pallas call."""
    if activation_function not in ("gelu", "relu", "leaky_relu"):
        raise ValueError(f"Unsupported activation function: {activation_function}")

    n_layers = len(params)
    sizes = [params[0][0].shape[1]] + [w.shape[0] for w, _ in params]   # [in, h0, ..., out]
    in_features, out_features = sizes[0], sizes[-1]
    # Only hidden widths are padded to lane multiples (lane-dense intermediates, exact zeros).
    # Input K and output N stay unpadded -> no host-side pad of x, no post-kernel slice of out.
    padded = [in_features] + [_round_up(s, _LANE) for s in sizes[1:-1]] + [out_features]

    # ---- hoisted parameter prep: transpose to (in, out), zero-pad hidden dims, cast ----
    w_pads, b_pads = [], []
    for li, (w, b) in enumerate(params):
        kp, npad = padded[li], padded[li + 1]
        wt = jnp.zeros((kp, npad), matmul_dtype)
        wt = wt.at[:w.shape[1], :w.shape[0]].set(jnp.transpose(w).astype(matmul_dtype))
        bp = jnp.zeros((1, npad), jnp.float32)
        bp = bp.at[0, :b.shape[0]].set(b.astype(jnp.float32))
        w_pads.append(wt)
        b_pads.append(bp)

    resident_bytes = (sum(int(wt.size) * wt.dtype.itemsize for wt in w_pads)
                      + sum(int(bp.size) * bp.dtype.itemsize for bp in b_pads))
    max_width = max(padded)
    vmem_cap = _vmem_capacity_bytes()
    # TODO(synk): if resident padded weights ever exceed the VMEM budget, fall back to an
    # inner K/N-tiled pltpu.emit_pipeline over weight tiles instead of keeping them resident.

    kernel = functools.partial(_fused_mlp_kernel, n_layers=n_layers,
                               activation=activation_function, matmul_dtype=matmul_dtype,
                               approximate_gelu=approximate_gelu)

    def forward(x):
        orig_shape = x.shape
        assert orig_shape[-1] == in_features
        x2d = x.reshape(-1, in_features)
        M = x2d.shape[0]
        x_isz = jnp.dtype(x.dtype).itemsize
        o_isz = x_isz

        # ---- VMEM-budget-aware tile selection -------------------------------------------
        # per-row: double-buffered input + output tiles, plus ~f32+bf16 live activation slabs.
        per_row = 2 * in_features * x_isz + 2 * out_features * o_isz + 8 * max_width
        budget = int(vmem_cap * 0.7)
        avail = max(budget - resident_bytes, 0)
        tm = min(tile_m, max(_SUBLANE, avail // max(per_row, 1)))
        if tm >= 256:
            tm = (tm // 256) * 256                      # large tiles: multiples of 256
        else:
            tm = max(_SUBLANE, (tm // _SUBLANE) * _SUBLANE)
        tm = min(tm, _round_up(M, _SUBLANE))            # never bigger than (rounded) M
        grid = (pl.cdiv(M, tm),)                        # no M padding; last tile writes masked

        in_specs = [pl.BlockSpec((tm, in_features), lambda i: (i, 0))]
        # weights / biases: whole-array, single-copy VMEM residents (no double-buffering)
        in_specs += [pl.BlockSpec(memory_space=pltpu.MemorySpace.VMEM)] * (2 * n_layers)
        out_specs = pl.BlockSpec((tm, out_features), lambda i: (i, 0))

        needed = resident_bytes + tm * per_row + (2 << 20)
        vmem_limit = int(min(int(vmem_cap * 0.9), max(needed * 5 // 4, 32 * 1024 * 1024)))

        flops = 2 * M * sum(padded[i] * padded[i + 1] for i in range(n_layers))
        transcendentals = M * sum(padded[1:-1]) if activation_function == "gelu" else 0
        bytes_accessed = (M * in_features * x_isz + resident_bytes
                          + M * out_features * o_isz)

        out = pl.pallas_call(
            kernel,
            out_shape=jax.ShapeDtypeStruct((M, out_features), x.dtype),
            grid=grid,
            in_specs=in_specs,
            out_specs=out_specs,
            compiler_params=pltpu.CompilerParams(
                dimension_semantics=("parallel",),
                vmem_limit_bytes=vmem_limit),
            cost_estimate=pl.CostEstimate(flops=flops,
                                          transcendentals=transcendentals,
                                          bytes_accessed=bytes_accessed),
        )(x2d, *w_pads, *b_pads)

        return out.reshape(orig_shape[:-1] + (out_features,))

    return jax.jit(forward)


if __name__ == "__main__":
    key = jax.random.PRNGKey(0)
    k_in, k_params = jax.random.split(key)

    batch, seq = 2, 8
    input_size, hidden_sizes, output_size = 32, [64, 48], 16

    x = jax.random.normal(k_in, (batch, seq, input_size), dtype=jnp.float32)
    params = init_mlp_params(k_params, input_size, output_size, hidden_sizes)

    mlp = make_mlp_forward(params, activation_function="gelu")
    out = mlp(x)
    jax.block_until_ready(out)

    # pure-JAX reference with the same bf16-matmul / f32-accumulate numerics (exact-erf GELU)
    ref = x.reshape(-1, input_size)
    for li, (w, b) in enumerate(params):
        ref = jnp.dot(ref.astype(jnp.bfloat16),
                      jnp.transpose(w).astype(jnp.bfloat16),
                      preferred_element_type=jnp.float32) + b
        if li < len(params) - 1:
            ref = 0.5 * ref * (1.0 + lax.erf(ref * (1.0 / math.sqrt(2.0))))
    ref = ref.reshape(batch, seq, output_size)

    assert out.shape == (batch, seq, output_size)
    assert out.dtype == x.dtype
    assert jnp.allclose(out, ref, atol=2e-3, rtol=2e-3), float(jnp.max(jnp.abs(out - ref)))

    print("KERNEL_OK")
</pallas_src>

<mosaic_0001>
module attributes {stable_mosaic.version = 11 : i64} {
  func.func @_fused_mlp_kernel(%arg0: i32, %arg1: memref<16x32xf32, #tpu.memory_space<vmem>>, %arg2: memref<32x128xbf16, #tpu.memory_space<vmem>>, %arg3: memref<128x128xbf16, #tpu.memory_space<vmem>>, %arg4: memref<128x16xbf16, #tpu.memory_space<vmem>>, %arg5: memref<1x128xf32, #tpu.memory_space<vmem>>, %arg6: memref<1x128xf32, #tpu.memory_space<vmem>>, %arg7: memref<1x16xf32, #tpu.memory_space<vmem>>, %arg8: memref<16x16xf32, #tpu.memory_space<vmem>>) attributes {dimension_semantics = [#tpu.dimension_semantics<parallel>], iteration_bounds = array<i64: 1>, scalar_prefetch = 0 : i64, scratch_operands = 0 : i64, tpu.core_type = #tpu.core_type<tc>, window_params = [{transform_indices = @transform_0, window_bounds = array<i64: 16, 32>}, {pipeline_mode = #tpu.pipeline_mode<synchronous>, transform_indices = @transform_1, window_bounds = array<i64: 32, 128>}, {pipeline_mode = #tpu.pipeline_mode<synchronous>, transform_indices = @transform_2, window_bounds = array<i64: 128, 128>}, {pipeline_mode = #tpu.pipeline_mode<synchronous>, transform_indices = @transform_3, window_bounds = array<i64: 128, 16>}, {pipeline_mode = #tpu.pipeline_mode<synchronous>, transform_indices = @transform_4, window_bounds = array<i64: 1, 128>}, {pipeline_mode = #tpu.pipeline_mode<synchronous>, transform_indices = @transform_5, window_bounds = array<i64: 1, 128>}, {pipeline_mode = #tpu.pipeline_mode<synchronous>, transform_indices = @transform_6, window_bounds = array<i64: 1, 16>}, {transform_indices = @transform_7, window_bounds = array<i64: 16, 16>}]} {
    %c0 = arith.constant 0 : index
    %c0_0 = arith.constant 0 : index
    %0 = vector.load %arg1[%c0, %c0_0] : memref<16x32xf32, #tpu.memory_space<vmem>>, vector<16x32xf32>
    %1 = arith.truncf %0 : vector<16x32xf32> to vector<16x32xbf16>
    %c0_1 = arith.constant 0 : index
    %c0_2 = arith.constant 0 : index
    %2 = vector.load %arg2[%c0_1, %c0_2] : memref<32x128xbf16, #tpu.memory_space<vmem>>, vector<32x128xbf16>
    %cst = arith.constant dense<0.000000e+00> : vector<16x128xf32>
    %3 = tpu.matmul %1, %2, %cst {dimension_numbers = #tpu.dot_dimension_numbers<[1], [0], [0], [1], [0, 0, 1, 1], [], []>} : vector<16x32xbf16>, vector<32x128xbf16>, vector<16x128xf32> -> vector<16x128xf32>
    %c0_3 = arith.constant 0 : index
    %c0_4 = arith.constant 0 : index
    %4 = vector.load %arg5[%c0_3, %c0_4] : memref<1x128xf32, #tpu.memory_space<vmem>>, vector<1x128xf32>
    %5 = vector.broadcast %4 : vector<1x128xf32> to vector<16x128xf32>
    %6 = arith.addf %3, %5 : vector<16x128xf32>
    %cst_5 = arith.constant 5.000000e-01 : f32
    %7 = vector.broadcast %cst_5 : f32 to vector<16x128xf32>
    %8 = arith.mulf %7, %6 : vector<16x128xf32>
    %cst_6 = arith.constant 0.707106769 : f32
    %9 = vector.broadcast %cst_6 : f32 to vector<16x128xf32>
    %10 = arith.mulf %6, %9 : vector<16x128xf32>
    %11 = math.erf %10 : vector<16x128xf32>
    %cst_7 = arith.constant 1.000000e+00 : f32
    %12 = vector.broadcast %cst_7 : f32 to vector<16x128xf32>
    %13 = arith.addf %12, %11 : vector<16x128xf32>
    %14 = arith.mulf %8, %13 : vector<16x128xf32>
    %15 = arith.truncf %14 : vector<16x128xf32> to vector<16x128xbf16>
    %c0_8 = arith.constant 0 : index
    %c0_9 = arith.constant 0 : index
    %16 = vector.load %arg3[%c0_8, %c0_9] : memref<128x128xbf16, #tpu.memory_space<vmem>>, vector<128x128xbf16>
    %cst_10 = arith.constant dense<0.000000e+00> : vector<16x128xf32>
    %17 = tpu.matmul %15, %16, %cst_10 {dimension_numbers = #tpu.dot_dimension_numbers<[1], [0], [0], [1], [0, 0, 1, 1], [], []>} : vector<16x128xbf16>, vector<128x128xbf16>, vector<16x128xf32> -> vector<16x128xf32>
    %c0_11 = arith.constant 0 : index
    %c0_12 = arith.constant 0 : index
    %18 = vector.load %arg6[%c0_11, %c0_12] : memref<1x128xf32, #tpu.memory_space<vmem>>, vector<1x128xf32>
    %19 = vector.broadcast %18 : vector<1x128xf32> to vector<16x128xf32>
    %20 = arith.addf %17, %19 : vector<16x128xf32>
    %cst_13 = arith.constant 5.000000e-01 : f32
    %21 = vector.broadcast %cst_13 : f32 to vector<16x128xf32>
    %22 = arith.mulf %21, %20 : vector<16x128xf32>
    %cst_14 = arith.constant 0.707106769 : f32
    %23 = vector.broadcast %cst_14 : f32 to vector<16x128xf32>
    %24 = arith.mulf %20, %23 : vector<16x128xf32>
    %25 = math.erf %24 : vector<16x128xf32>
    %cst_15 = arith.constant 1.000000e+00 : f32
    %26 = vector.broadcast %cst_15 : f32 to vector<16x128xf32>
    %27 = arith.addf %26, %25 : vector<16x128xf32>
    %28 = arith.mulf %22, %27 : vector<16x128xf32>
    %29 = arith.truncf %28 : vector<16x128xf32> to vector<16x128xbf16>
    %c0_16 = arith.constant 0 : index
    %c0_17 = arith.constant 0 : index
    %30 = vector.load %arg4[%c0_16, %c0_17] : memref<128x16xbf16, #tpu.memory_space<vmem>>, vector<128x16xbf16>
    %cst_18 = arith.constant dense<0.000000e+00> : vector<16x16xf32>
    %31 = tpu.matmul %29, %30, %cst_18 {dimension_numbers = #tpu.dot_dimension_numbers<[1], [0], [0], [1], [0, 0, 1, 1], [], []>} : vector<16x128xbf16>, vector<128x16xbf16>, vector<16x16xf32> -> vector<16x16xf32>
    %c0_19 = arith.constant 0 : index
    %c0_20 = arith.constant 0 : index
    %32 = vector.load %arg7[%c0_19, %c0_20] : memref<1x16xf32, #tpu.memory_space<vmem>>, vector<1x16xf32>
    %33 = vector.broadcast %32 : vector<1x16xf32> to vector<16x16xf32>
    %34 = arith.addf %31, %33 : vector<16x16xf32>
    %c0_21 = arith.constant 0 : index
    %c0_22 = arith.constant 0 : index
    %35 = vector.load %arg8[%c0_21, %c0_22] : memref<16x16xf32, #tpu.memory_space<vmem>>, vector<16x16xf32>
    tpu.vector_store %arg8[%c0_21, %c0_22], %34 {strides = array<i32>} : memref<16x16xf32, #tpu.memory_space<vmem>>, vector<16x16xf32>,
    return
  }
  func.func @transform_0(%arg0: i32) -> (i32, i32) {
    %c0_i32 = arith.constant 0 : i32
    %c0_i32_0 = arith.constant 0 : i32
    return %arg0, %c0_i32 : i32, i32
  }
  func.func @transform_1(%arg0: i32) -> (i32, i32) {
    %c0_i32 = arith.constant 0 : i32
    %c0_i32_0 = arith.constant 0 : i32
    %c0_i32_1 = arith.constant 0 : i32
    return %c0_i32, %c0_i32_0 : i32, i32
  }
  func.func @transform_2(%arg0: i32) -> (i32, i32) {
    %c0_i32 = arith.constant 0 : i32
    %c0_i32_0 = arith.constant 0 : i32
    %c0_i32_1 = arith.constant 0 : i32
    return %c0_i32, %c0_i32_0 : i32, i32
  }
  func.func @transform_3(%arg0: i32) -> (i32, i32) {
    %c0_i32 = arith.constant 0 : i32
    %c0_i32_0 = arith.constant 0 : i32
    %c0_i32_1 = arith.constant 0 : i32
    return %c0_i32, %c0_i32_0 : i32, i32
  }
  func.func @transform_4(%arg0: i32) -> (i32, i32) {
    %c0_i32 = arith.constant 0 : i32
    %c0_i32_0 = arith.constant 0 : i32
    %c0_i32_1 = arith.constant 0 : i32
    return %c0_i32, %c0_i32_0 : i32, i32
  }
  func.func @transform_5(%arg0: i32) -> (i32, i32) {
    %c0_i32 = arith.constant 0 : i32
    %c0_i32_0 = arith.constant 0 : i32
    %c0_i32_1 = arith.constant 0 : i32
    return %c0_i32, %c0_i32_0 : i32, i32
  }
  func.func @transform_6(%arg0: i32) -> (i32, i32) {
    %c0_i32 = arith.constant 0 : i32
    %c0_i32_0 = arith.constant 0 : i32
    %c0_i32_1 = arith.constant 0 : i32
    return %c0_i32, %c0_i32_0 : i32, i32
  }
  func.func @transform_7(%arg0: i32) -> (i32, i32) {
    %c0_i32 = arith.constant 0 : i32
    %c0_i32_0 = arith.constant 0 : i32
    return %arg0, %c0_i32 : i32, i32
  }
}

</mosaic_0001>

<llo_original>
// kernel: forward.1
$region0: #{forward.1}
  #allocation0 [shape = 'u32[]', space=smem, size = 0x4, offset = 0x4, fixed_abs, tag = 'smem constant byte address 0x4 - core index']
  #allocation1 [shape = 'u32[144,128]{1,0:T(1,128)}', space=vmem, size = 0x12000, scoped, tag = 'internal scratch']
  %s0 = inlined_call_operand.hbm [shape: f32[16,32], index: 0, kind: input, shape index: {}]
  %s1 = inlined_call_operand.vmem [shape: bf16[32,128], index: 1, kind: input, shape index: {}]
  %s2 = inlined_call_operand.hbm [shape: bf16[128,128], index: 2, kind: input, shape index: {}]
  %s3 = inlined_call_operand.hbm [shape: bf16[128,16], index: 3, kind: input, shape index: {}]
  %s4 = inlined_call_operand.vmem [shape: f32[1,128], index: 4, kind: input, shape index: {}]
  %s5 = inlined_call_operand.vmem [shape: f32[1,128], index: 5, kind: input, shape index: {}]
  %s6 = inlined_call_operand.vmem [shape: f32[1,16], index: 6, kind: input, shape index: {}]
  %s7 = inlined_call_operand.hbm [shape: f32[16,16], index: 7, kind: output, shape index: {}]
  %s8 = sld [smem:[#allocation0]]
  $region50: #{forward.1} parent=0
    _
  %s10 = ssub.s32 1, %s8
  %s11 = scalar_select 0, %s10, %s8
  $region1: #{forward.1} parent=0
    #allocation2 [shape = 'u8[8192]{0}', space=vmem, size = 0x2000, scoped, tag = 'input window, operand 0, single buffered']
    #allocation3 [shape = 's32[1]{0}', space=sflag, size = 0x4, scoped, tag = 'scoped memory for forward.1']
    #allocation4 [shape = 's32[1]{0}', space=sflag, size = 0x4, scoped, tag = 'scoped memory for forward.1']
    #allocation5 [shape = 'u8[32768]{0}', space=vmem, size = 0x8000, scoped, tag = 'input window, operand 2, single buffered']
    #allocation6 [shape = 's32[1]{0}', space=sflag, size = 0x4, scoped, tag = 'scoped memory for forward.1']
    #allocation7 [shape = 'u8[32768]{0}', space=vmem, size = 0x8000, scoped, tag = 'input window, operand 3, single buffered']
    #allocation8 [shape = 'u8[8192]{0}', space=vmem, size = 0x2000, scoped, tag = 'output window, operand 0, single buffered']
    %12 = vsyncpa [#allocation3], 0
    %13 = vsyncpa [#allocation6], 0
    %14 = vsyncpa [#allocation4], 0
    // Predicated region
    $region2: #{forward.1} parent=1 // pred_check
      _
    $region3: #{forward.1} parent=1 // pred_check_branch
      %16 = sbr.rel (0) target = $region5
    $region4: #{forward.1} parent=1 // pred_region
      %s18 = ssub.s32 256, 256
      %19 = vsyncadd [#allocation3], %s18
      %s20 = sshll.u32 [#allocation2], 4
      %s21 = int_to_ptr.vmem [resolvable:$true] %s20
      %26 = dma.hbm_to_vmem [thread:$0]  %s0, 256, %s21, [#allocation3], 128, 128, 8
    $region5: #{forward.1} parent=1 // pred_fallthru
      _
    // Predicated region
    $region6: #{forward.1} parent=1 // pred_check
      _
    $region7: #{forward.1} parent=1 // pred_check_branch
      %28 = sbr.rel (0) target = $region9
    $region8: #{forward.1} parent=1 // pred_region
      _
    $region9: #{forward.1} parent=1 // pred_fallthru
      _
    // Predicated region
    $region10: #{forward.1} parent=1 // pred_check
      _
    $region11: #{forward.1} parent=1 // pred_check_branch
      %30 = sbr.rel (0) target = $region13
    $region12: #{forward.1} parent=1 // pred_region
      %s32 = ssub.s32 1024, 1024
      %33 = vsyncadd [#allocation6], %s32
      %s34 = sshll.u32 [#allocation5], 4
      %s35 = int_to_ptr.vmem [resolvable:$true] %s34
      %40 = dma.hbm_to_vmem [thread:$0]  %s2, 1024, %s35, [#allocation6], 64, 64, 4
    $region13: #{forward.1} parent=1 // pred_fallthru
      _
    // Predicated region
    $region14: #{forward.1} parent=1 // pred_check
      _
    $region15: #{forward.1} parent=1 // pred_check_branch
      %42 = sbr.rel (0) target = $region17
    $region16: #{forward.1} parent=1 // pred_region
      %s44 = ssub.s32 1024, 1024
      %45 = vsyncadd [#allocation6], %s44
      %s46 = sshll.u32 [#allocation7], 4
      %s47 = int_to_ptr.vmem [resolvable:$true] %s46
      %52 = dma.hbm_to_vmem [thread:$0]  %s3, 1024, %s47, [#allocation6], 64, 64, 4
    $region17: #{forward.1} parent=1 // pred_fallthru
      _
    // Predicated region
    $region18: #{forward.1} parent=1 // pred_check
      _
    $region19: #{forward.1} parent=1 // pred_check_branch
      %54 = sbr.rel (0) target = $region21
    $region20: #{forward.1} parent=1 // pred_region
      _
    $region21: #{forward.1} parent=1 // pred_fallthru
      _
    // Predicated region
    $region22: #{forward.1} parent=1 // pred_check
      _
    $region23: #{forward.1} parent=1 // pred_check_branch
      %56 = sbr.rel (0) target = $region25
    $region24: #{forward.1} parent=1 // pred_region
      _
    $region25: #{forward.1} parent=1 // pred_fallthru
      _
    // Predicated region
    $region26: #{forward.1} parent=1 // pred_check
      _
    $region27: #{forward.1} parent=1 // pred_check_branch
      %58 = sbr.rel (0) target = $region29
    $region28: #{forward.1} parent=1 // pred_region
      _
    $region29: #{forward.1} parent=1 // pred_fallthru
      _
    // Predicated region
    $region30: #{forward.1} parent=1 // pred_check
      _
    $region31: #{forward.1} parent=1 // pred_check_branch
      %60 = sbr.rel (0) target = $region33
    $region32: #{forward.1} parent=1 // pred_region
      %61 = dma.done [#allocation3], 256
    $region33: #{forward.1} parent=1 // pred_fallthru
      _
    // Predicated region
    $region34: #{forward.1} parent=1 // pred_check
      _
    $region35: #{forward.1} parent=1 // pred_check_branch
      %63 = sbr.rel (0) target = $region37
    $region36: #{forward.1} parent=1 // pred_region
      %64 = dma.done [#allocation6], 1024
    $region37: #{forward.1} parent=1 // pred_fallthru
      _
    // Predicated region
    $region38: #{forward.1} parent=1 // pred_check
      _
    $region39: #{forward.1} parent=1 // pred_check_branch
      %66 = sbr.rel (0) target = $region41
    $region40: #{forward.1} parent=1 // pred_region
      %67 = dma.done [#allocation6], 1024
    $region41: #{forward.1} parent=1 // pred_fallthru
      _
    %v69 = vld [vmem:[#allocation2] sm:$0xff]
    %v70 = vld [vmem:[#allocation2 + $0x8] sm:$0xff]
    %v71 = vpack.c.bf16 %v70, %v69
    %v72 = vld [vmem:[%s1] sm:$0xf]
    %v73 = vld [vmem:[%s1 + $0x4] sm:$0xf]
    %v74 = vld [vmem:[%s1 + $0x8] sm:$0xf]
    %v75 = vld [vmem:[%s1 + $0xc] sm:$0xf]
    %v76 = vld [vmem:[%s4] sm:$0x1]
    %v78 = vlaneseq
    %v79 = vshrl.u32 %v78, 7
    %v80 = vsub.s32 0, %v79
    %v81 = vrot.slane %v76, %v80
    %v87 = vunpack.c.l.b16 %v72
    %v88 = vunpack.c.l.b16 %v73
    %v89 = vunpack.c.l.b16 %v74
    %v90 = vunpack.c.l.b16 %v75
    %v91 = vpack.c.b16 %v88, %v87
    %v92 = vpack.c.b16 %v90, %v89
    %vm95 = vcmask 261120
    %v97 = vsel %vm95, %v71, 0
    %99 = vmatprep.subr.bf16.mxu0 0
    %100 = vmatpush1.bf16.msra.mxu0 %v91
    %101 = vmatprep.subr.bf16.mxu0 0
    %102 = vmatpush1.bf16.msra.mxu0 %v92
    %103 = vmatprep.subr.bf16.mxu0 0
    %104 = vmatpush1.bf16.msra.mxu0 0
    %105 = vmatprep.subr.bf16.mxu0 0
    %106 = vmatpush1.bf16.msra.mxu0 0
    %107 = vmatprep.subr.bf16.mxu0 0
    %108 = vmatpush1.bf16.msra.mxu0 0
    %109 = vmatprep.subr.bf16.mxu0 0
    %110 = vmatpush1.bf16.msra.mxu0 0
    %111 = vmatprep.subr.bf16.mxu0 0
    %112 = vmatpush1.bf16.msra.mxu0 0
    %113 = vmatprep.subr.bf16.mxu0 0
    %114 = vmatpush1.bf16.msra.mxu0 0
    %115 = vmatprep.subr.bf16.mxu0 0
    %116 = vmatpush1.bf16.msra.mxu0 0
    %117 = vmatprep.subr.bf16.mxu0 0
    %118 = vmatpush1.bf16.msra.mxu0 0
    %119 = vmatprep.subr.bf16.mxu0 0
    %120 = vmatpush1.bf16.msra.mxu0 0
    %121 = vmatprep.subr.bf16.mxu0 0
    %122 = vmatpush1.bf16.msra.mxu0 0
    %123 = vmatprep.subr.bf16.mxu0 0
    %124 = vmatpush1.bf16.msra.mxu0 0
    %125 = vmatprep.subr.bf16.mxu0 0
    %126 = vmatpush1.bf16.msra.mxu0 0
    %127 = vmatprep.subr.bf16.mxu0 0
    %128 = vmatpush1.bf16.msra.mxu0 0
    %129 = vmatprep.subr.bf16.mxu0 0
    %130 = vmatpush1.bf16.msra.mxu0 0
    %131 = vmatprep.mubr.bf16.mxu0 0
    %132 = vmatmul.mubr.bf16.gmra.mrb[0].mxu0 %v97
    %v133 = vpop.f32.mrb[0].mxu0
    %v134 = vadd.f32 %v81, %v133
    %v135 = vpop.f32.mrb[0].mxu0
    %v136 = vpop.f32.mrb[0].mxu0
    %v137 = vadd.f32 %v81, %v136
    %v138 = vpop.f32.mrb[0].mxu0
    %139 = vdwg.mxu0
    %v140 = vmul.f32 %v134, 0.5
    %v141 = vmul.f32 %v137, 0.5
    %v142 = vmul.f32 %v134, 0.70710677
    %v143 = vmul.f32 %v137, 0.70710677
    %v144 = verf.f32.pop %v142
    %v145 = verf.f32.pop %v143
    %v146 = vadd.f32 %v144, 1.0
    %v147 = vadd.f32 %v145, 1.0
    %v148 = vmul.f32 %v140, %v146
    %v149 = vmul.f32 %v141, %v147
    %v150 = vpack.c.bf16 %v149, %v148
    %v151 = vld [vmem:[#allocation5] sm:$0xf]
    %v152 = vld [vmem:[#allocation5 + $0x4] sm:$0xf]
    %v153 = vld [vmem:[#allocation5 + $0x8] sm:$0xf]
    %v154 = vld [vmem:[#allocation5 + $0xc] sm:$0xf]
    %v155 = vld [vmem:[#allocation5 + $0x10] sm:$0xf]
    %v156 = vld [vmem:[#allocation5 + $0x14] sm:$0xf]
    %v157 = vld [vmem:[#allocation5 + $0x18] sm:$0xf]
    %v158 = vld [vmem:[#allocation5 + $0x1c] sm:$0xf]
    %v159 = vld [vmem:[#allocation5 + $0x20] sm:$0xf]
    %v160 = vld [vmem:[#allocation5 + $0x24] sm:$0xf]
    %v161 = vld [vmem:[#allocation5 + $0x28] sm:$0xf]
    %v162 = vld [vmem:[#allocation5 + $0x2c] sm:$0xf]
    %v163 = vld [vmem:[#allocation5 + $0x30] sm:$0xf]
    %v164 = vld [vmem:[#allocation5 + $0x34] sm:$0xf]
    %v165 = vld [vmem:[#allocation5 + $0x38] sm:$0xf]
    %v166 = vld [vmem:[#allocation5 + $0x3c] sm:$0xf]
    %v167 = vld [vmem:[%s5] sm:$0x1]
    %v169 = vlaneseq
    %v170 = vshrl.u32 %v169, 7
    %v171 = vsub.s32 0, %v170
    %v172 = vrot.slane %v167, %v171
    %v190 = vunpack.c.l.b16 %v151
    %v191 = vunpack.c.l.b16 %v152
    %v192 = vunpack.c.l.b16 %v153
    %v193 = vunpack.c.l.b16 %v154
    %v194 = vunpack.c.l.b16 %v155
    %v195 = vunpack.c.l.b16 %v156
    %v196 = vunpack.c.l.b16 %v157
    %v197 = vunpack.c.l.b16 %v158
    %v198 = vunpack.c.l.b16 %v159
    %v199 = vunpack.c.l.b16 %v160
    %v200 = vunpack.c.l.b16 %v161
    %v201 = vunpack.c.l.b16 %v162
    %v202 = vunpack.c.l.b16 %v163
    %v203 = vunpack.c.l.b16 %v164
    %v204 = vunpack.c.l.b16 %v165
    %v205 = vunpack.c.l.b16 %v166
    %v206 = vpack.c.b16 %v191, %v190
    %v207 = vpack.c.b16 %v193, %v192
    %v208 = vpack.c.b16 %v195, %v194
    %v209 = vpack.c.b16 %v197, %v196
    %v210 = vpack.c.b16 %v199, %v198
    %v211 = vpack.c.b16 %v201, %v200
    %v212 = vpack.c.b16 %v203, %v202
    %v213 = vpack.c.b16 %v205, %v204
    %222 = vmatprep.subr.bf16.mxu0 0
    %223 = vmatpush1.bf16.msra.mxu0 %v206
    %224 = vmatprep.subr.bf16.mxu0 0
    %225 = vmatpush1.bf16.msra.mxu0 %v207
    %226 = vmatprep.subr.bf16.mxu0 0
    %227 = vmatpush1.bf16.msra.mxu0 %v208
    %228 = vmatprep.subr.bf16.mxu0 0
    %229 = vmatpush1.bf16.msra.mxu0 %v209
    %230 = vmatprep.subr.bf16.mxu0 0
    %231 = vmatpush1.bf16.msra.mxu0 %v210
    %232 = vmatprep.subr.bf16.mxu0 0
    %233 = vmatpush1.bf16.msra.mxu0 %v211
    %234 = vmatprep.subr.bf16.mxu0 0
    %235 = vmatpush1.bf16.msra.mxu0 %v212
    %236 = vmatprep.subr.bf16.mxu0 0
    %237 = vmatpush1.bf16.msra.mxu0 %v213
    %238 = vmatprep.subr.bf16.mxu0 0
    %239 = vmatpush1.bf16.msra.mxu0 0
    %240 = vmatprep.subr.bf16.mxu0 0
    %241 = vmatpush1.bf16.msra.mxu0 0
    %242 = vmatprep.subr.bf16.mxu0 0
    %243 = vmatpush1.bf16.msra.mxu0 0
    %244 = vmatprep.subr.bf16.mxu0 0
    %245 = vmatpush1.bf16.msra.mxu0 0
    %246 = vmatprep.subr.bf16.mxu0 0
    %247 = vmatpush1.bf16.msra.mxu0 0
    %248 = vmatprep.subr.bf16.mxu0 0
    %249 = vmatpush1.bf16.msra.mxu0 0
    %250 = vmatprep.subr.bf16.mxu0 0
    %251 = vmatpush1.bf16.msra.mxu0 0
    %252 = vmatprep.subr.bf16.mxu0 0
    %253 = vmatpush1.bf16.msra.mxu0 0
    %254 = vmatprep.mubr.bf16.mxu0 0
    %255 = vmatmul.mubr.bf16.gmra.mrb[0].mxu0 %v150
    %v256 = vpop.f32.mrb[0].mxu0
    %v257 = vadd.f32 %v172, %v256
    %v258 = vpop.f32.mrb[0].mxu0
    %v259 = vpop.f32.mrb[0].mxu0
    %v260 = vadd.f32 %v172, %v259
    %v261 = vpop.f32.mrb[0].mxu0
    %262 = vdwg.mxu0
    %v263 = vmul.f32 %v257, 0.5
    %v264 = vmul.f32 %v260, 0.5
    %v265 = vmul.f32 %v257, 0.70710677
    %v266 = vmul.f32 %v260, 0.70710677
    %v267 = verf.f32.pop %v265
    %v268 = verf.f32.pop %v266
    %v269 = vadd.f32 %v267, 1.0
    %v270 = vadd.f32 %v268, 1.0
    %v271 = vmul.f32 %v263, %v269
    %v272 = vmul.f32 %v264, %v270
    %v273 = vpack.c.bf16 %v272, %v271
    %v274 = vld [vmem:[#allocation7] sm:$0xf]
    %v275 = vld [vmem:[#allocation7 + $0x4] sm:$0xf]
    %v276 = vld [vmem:[#allocation7 + $0x8] sm:$0xf]
    %v277 = vld [vmem:[#allocation7 + $0xc] sm:$0xf]
    %v278 = vld [vmem:[#allocation7 + $0x10] sm:$0xf]
    %v279 = vld [vmem:[#allocation7 + $0x14] sm:$0xf]
    %v280 = vld [vmem:[#allocation7 + $0x18] sm:$0xf]
    %v281 = vld [vmem:[#allocation7 + $0x1c] sm:$0xf]
    %v282 = vld [vmem:[#allocation7 + $0x20] sm:$0xf]
    %v283 = vld [vmem:[#allocation7 + $0x24] sm:$0xf]
    %v284 = vld [vmem:[#allocation7 + $0x28] sm:$0xf]
    %v285 = vld [vmem:[#allocation7 + $0x2c] sm:$0xf]
    %v286 = vld [vmem:[#allocation7 + $0x30] sm:$0xf]
    %v287 = vld [vmem:[#allocation7 + $0x34] sm:$0xf]
    %v288 = vld [vmem:[#allocation7 + $0x38] sm:$0xf]
    %v289 = vld [vmem:[#allocation7 + $0x3c] sm:$0xf]
    %v290 = vld [vmem:[%s6] sm:$0x1]
    %v292 = vlaneseq
    %v293 = vshrl.u32 %v292, 7
    %v294 = vsub.s32 0, %v293
    %v295 = vrot.slane %v290, %v294
    %v313 = vunpack.c.l.b16 %v274
    %v314 = vunpack.c.l.b16 %v275
    %v315 = vunpack.c.l.b16 %v276
    %v316 = vunpack.c.l.b16 %v277
    %v317 = vunpack.c.l.b16 %v278
    %v318 = vunpack.c.l.b16 %v279
    %v319 = vunpack.c.l.b16 %v280
    %v320 = vunpack.c.l.b16 %v281
    %v321 = vunpack.c.l.b16 %v282
    %v322 = vunpack.c.l.b16 %v283
    %v323 = vunpack.c.l.b16 %v284
    %v324 = vunpack.c.l.b16 %v285
    %v325 = vunpack.c.l.b16 %v286
    %v326 = vunpack.c.l.b16 %v287
    %v327 = vunpack.c.l.b16 %v288
    %v328 = vunpack.c.l.b16 %v289
    %v329 = vpack.c.b16 %v314, %v313
    %v330 = vpack.c.b16 %v316, %v315
    %v331 = vpack.c.b16 %v318, %v317
    %v332 = vpack.c.b16 %v320, %v319
    %v333 = vpack.c.b16 %v322, %v321
    %v334 = vpack.c.b16 %v324, %v323
    %v335 = vpack.c.b16 %v326, %v325
    %v336 = vpack.c.b16 %v328, %v327
    %345 = vmatprep.subr.bf16.mxu0 0
    %346 = vmatpush1.bf16.msra.mxu0 %v329
    %347 = vmatprep.subr.bf16.mxu0 0
    %348 = vmatpush1.bf16.msra.mxu0 %v330
    %349 = vmatprep.subr.bf16.mxu0 0
    %350 = vmatpush1.bf16.msra.mxu0 %v331
    %351 = vmatprep.subr.bf16.mxu0 0
    %352 = vmatpush1.bf16.msra.mxu0 %v332
    %353 = vmatprep.subr.bf16.mxu0 0
    %354 = vmatpush1.bf16.msra.mxu0 %v333
    %355 = vmatprep.subr.bf16.mxu0 0
    %356 = vmatpush1.bf16.msra.mxu0 %v334
    %357 = vmatprep.subr.bf16.mxu0 0
    %358 = vmatpush1.bf16.msra.mxu0 %v335
    %359 = vmatprep.subr.bf16.mxu0 0
    %360 = vmatpush1.bf16.msra.mxu0 %v336
    %361 = vmatprep.subr.bf16.mxu0 0
    %362 = vmatpush1.bf16.msra.mxu0 0
    %363 = vmatprep.subr.bf16.mxu0 0
    %364 = vmatpush1.bf16.msra.mxu0 0
    %365 = vmatprep.subr.bf16.mxu0 0
    %366 = vmatpush1.bf16.msra.mxu0 0
    %367 = vmatprep.subr.bf16.mxu0 0
    %368 = vmatpush1.bf16.msra.mxu0 0
    %369 = vmatprep.subr.bf16.mxu0 0
    %370 = vmatpush1.bf16.msra.mxu0 0
    %371 = vmatprep.subr.bf16.mxu0 0
    %372 = vmatpush1.bf16.msra.mxu0 0
    %373 = vmatprep.subr.bf16.mxu0 0
    %374 = vmatpush1.bf16.msra.mxu0 0
    %375 = vmatprep.subr.bf16.mxu0 0
    %376 = vmatpush1.bf16.msra.mxu0 0
    %377 = vmatprep.mubr.bf16.mxu0 0
    %378 = vmatmul.mubr.bf16.gmra.mrb[0].mxu0 %v273
    %v379 = vpop.f32.mrb[0].mxu0
    %v380 = vadd.f32 %v295, %v379
    %v381 = vpop.f32.mrb[0].mxu0
    %v382 = vpop.f32.mrb[0].mxu0
    %v383 = vadd.f32 %v295, %v382
    %v384 = vpop.f32.mrb[0].mxu0
    %385 = vdwg.mxu0
    %vm386 = vcmask 130048
    %387 = vst.msk [vmem:[#allocation8] sm:$0xff] %vm386, %v380
    %388 = vst.msk [vmem:[#allocation8 + $0x8] sm:$0xff] %vm386, %v383
    // Predicated region
    $region42: #{forward.1} parent=1 // pred_check
      _
    $region43: #{forward.1} parent=1 // pred_check_branch
      %390 = sbr.rel (0) target = $region45
    $region44: #{forward.1} parent=1 // pred_region
      %s392 = ssub.s32 256, 256
      %393 = vsyncadd [#allocation4], %s392
      %s394 = sshll.u32 [#allocation8], 4
      %s395 = int_to_ptr.vmem [resolvable:$true] %s394
      %400 = dma.vmem_to_hbm [thread:$0]  %s395, 256, %s7, [#allocation4], 128, 128, 8
    $region45: #{forward.1} parent=1 // pred_fallthru
      _
    // Predicated region
    $region46: #{forward.1} parent=1 // pred_check
      _
    $region47: #{forward.1} parent=1 // pred_check_branch
      %402 = sbr.rel (0) target = $region49
    $region48: #{forward.1} parent=1 // pred_region
      %403 = dma.done [#allocation4], 256
    $region49: #{forward.1} parent=1 // pred_fallthru
      _
    %404 = vsyncpa [#allocation3], 1
    %405 = vsyncpa [#allocation6], 1
    %406 = vsyncpa [#allocation4], 1

</llo_original>
